<compile_context>
chip_gen: v7x
topology: tpu7x:2x2x1
jax: 0.10.0
libtpu: 0.0.40
codegen_flags: <defaults>
</compile_context>

<pallas_src>
import jax
import jax.numpy as jnp
from jax.experimental import pallas as pl
from jax.experimental.pallas import tpu as pltpu

IN_FEATURES = 1536
OUT_FEATURES = 2


def cls_kernel(x_ref, w_ref, b_ref, o_ref):
    # x_ref: (tb, 1536)  w_ref: (1536, 2)  b_ref: (1, 2)  o_ref: (tb, 2)
    logits = jnp.dot(x_ref[...], w_ref[...],
                     preferred_element_type=jnp.float32) + b_ref[...]
    # numerically stable softmax over last dim (size 2), exact divide
    m = jnp.max(logits, axis=-1, keepdims=True)
    e = jnp.exp(logits - m)
    s = jnp.sum(e, axis=-1, keepdims=True)
    o_ref[...] = (e / s).astype(o_ref.dtype)


def _round_up(x, m):
    return ((x + m - 1) // m) * m


def cls_forward(x, w, b, *, tb=512):
    """x: (B, 1536), w: (1536, 2), b: (2,) -> (B, 2) softmax probs.

    tb: batch-tile rows per grid step.  512 keeps the double-buffered x tile
    at 6 MiB; larger tiles are fine under the 32 MiB vmem limit set below.
    """
    B, F = x.shape
    assert F == IN_FEATURES

    # Effective tile: multiple of 8 sublanes, no bigger than the padded batch.
    tb_eff = min(tb, _round_up(B, 8))
    tb_eff = max(8, (tb_eff // 8) * 8)
    B_pad = _round_up(B, tb_eff)
    if B_pad != B:
        # Padded rows just compute softmax(bias); sliced away below.
        x = jnp.pad(x, ((0, B_pad - B), (0, 0)))

    b2d = b.reshape(1, OUT_FEATURES)

    out = pl.pallas_call(
        cls_kernel,
        out_shape=jax.ShapeDtypeStruct((B_pad, OUT_FEATURES), x.dtype),
        grid_spec=pltpu.PrefetchScalarGridSpec(
            num_scalar_prefetch=0,
            grid=(B_pad // tb_eff,),
            in_specs=[
                pl.BlockSpec((tb_eff, IN_FEATURES), lambda i: (i, 0)),
                pl.BlockSpec((IN_FEATURES, OUT_FEATURES), lambda i: (0, 0)),
                pl.BlockSpec((1, OUT_FEATURES), lambda i: (0, 0)),
            ],
            out_specs=pl.BlockSpec((tb_eff, OUT_FEATURES), lambda i: (i, 0)),
        ),
        compiler_params=pltpu.CompilerParams(
            dimension_semantics=("parallel",),
            vmem_limit_bytes=32 * 1024 * 1024,
        ),
    )(x, w, b2d)

    return out[:B] if B_pad != B else out


if __name__ == "__main__":
    key = jax.random.PRNGKey(0)
    kx, kw, kb = jax.random.split(key, 3)

    B = 8
    x = jax.random.normal(kx, (B, IN_FEATURES), dtype=jnp.float32)

    # Deterministic param init mimicking nn.Linear default: U(-k, k), k=1/sqrt(fan_in)
    k = 1.0 / (IN_FEATURES ** 0.5)
    w = jax.random.uniform(kw, (IN_FEATURES, OUT_FEATURES),
                           minval=-k, maxval=k, dtype=jnp.float32)
    b = jax.random.uniform(kb, (OUT_FEATURES,),
                           minval=-k, maxval=k, dtype=jnp.float32)

    out = cls_forward(x, w, b)
    out = jax.block_until_ready(out)

    # correctness check against pure-JAX reference (eval-mode dropout = identity)
    ref = jax.nn.softmax(x @ w + b, axis=-1)
    assert out.shape == (B, OUT_FEATURES)
    assert jnp.allclose(out, ref, atol=1e-4, rtol=1e-4)

    # also exercise a non-multiple batch to check the padding path
    B2 = 13
    x2 = jax.random.normal(kx, (B2, IN_FEATURES), dtype=jnp.float32)
    out2 = jax.block_until_ready(cls_forward(x2, w, b))
    ref2 = jax.nn.softmax(x2 @ w + b, axis=-1)
    assert out2.shape == (B2, OUT_FEATURES)
    assert jnp.allclose(out2, ref2, atol=1e-4, rtol=1e-4)

    print("KERNEL_OK")
</pallas_src>

<mosaic_0001>
module attributes {stable_mosaic.version = 11 : i64} {
  func.func @cls_kernel(%arg0: i32, %arg1: memref<8x1536xf32, #tpu.memory_space<vmem>>, %arg2: memref<1536x2xf32, #tpu.memory_space<vmem>>, %arg3: memref<1x2xf32, #tpu.memory_space<vmem>>, %arg4: memref<8x2xf32, #tpu.memory_space<vmem>>) attributes {dimension_semantics = [#tpu.dimension_semantics<parallel>], iteration_bounds = array<i64: 1>, scalar_prefetch = 0 : i64, scratch_operands = 0 : i64, tpu.core_type = #tpu.core_type<tc>, window_params = [{transform_indices = @transform_0, window_bounds = array<i64: 8, 1536>}, {pipeline_mode = #tpu.pipeline_mode<synchronous>, transform_indices = @transform_1, window_bounds = array<i64: 1536, 2>}, {pipeline_mode = #tpu.pipeline_mode<synchronous>, transform_indices = @transform_2, window_bounds = array<i64: 1, 2>}, {transform_indices = @transform_3, window_bounds = array<i64: 8, 2>}]} {
    %c0 = arith.constant 0 : index
    %c0_0 = arith.constant 0 : index
    %0 = vector.load %arg1[%c0, %c0_0] : memref<8x1536xf32, #tpu.memory_space<vmem>>, vector<8x1536xf32>
    %c0_1 = arith.constant 0 : index
    %c0_2 = arith.constant 0 : index
    %1 = vector.load %arg2[%c0_1, %c0_2] : memref<1536x2xf32, #tpu.memory_space<vmem>>, vector<1536x2xf32>
    %cst = arith.constant dense<0.000000e+00> : vector<8x2xf32>
    %2 = tpu.matmul %0, %1, %cst {dimension_numbers = #tpu.dot_dimension_numbers<[1], [0], [0], [1], [0, 0, 1, 1], [], []>} : vector<8x1536xf32>, vector<1536x2xf32>, vector<8x2xf32> -> vector<8x2xf32>
    %c0_3 = arith.constant 0 : index
    %c0_4 = arith.constant 0 : index
    %3 = vector.load %arg3[%c0_3, %c0_4] : memref<1x2xf32, #tpu.memory_space<vmem>>, vector<1x2xf32>
    %4 = vector.broadcast %3 : vector<1x2xf32> to vector<8x2xf32>
    %5 = arith.addf %2, %4 : vector<8x2xf32>
    %cst_5 = arith.constant dense<0xFF800000> : vector<8xf32>
    %6 = vector.multi_reduction <maximumf>, %5, %cst_5 [1] : vector<8x2xf32> to vector<8xf32>
    %7 = vector.shape_cast %6 : vector<8xf32> to vector<8x1xf32>
    %8 = vector.broadcast %7 : vector<8x1xf32> to vector<8x2xf32>
    %9 = arith.subf %5, %8 : vector<8x2xf32>
    %10 = math.exp %9 : vector<8x2xf32>
    %cst_6 = arith.constant dense<0.000000e+00> : vector<8xf32>
    %11 = vector.multi_reduction <add>, %10, %cst_6 [1] : vector<8x2xf32> to vector<8xf32>
    %12 = vector.shape_cast %11 : vector<8xf32> to vector<8x1xf32>
    %13 = vector.broadcast %12 : vector<8x1xf32> to vector<8x2xf32>
    %14 = arith.divf %10, %13 : vector<8x2xf32>
    %c0_7 = arith.constant 0 : index
    %c0_8 = arith.constant 0 : index
    %15 = vector.load %arg4[%c0_7, %c0_8] : memref<8x2xf32, #tpu.memory_space<vmem>>, vector<8x2xf32>
    tpu.vector_store %arg4[%c0_7, %c0_8], %14 {strides = array<i32>} : memref<8x2xf32, #tpu.memory_space<vmem>>, vector<8x2xf32>,
    return
  }
  func.func @transform_0(%arg0: i32) -> (i32, i32) {
    %c0_i32 = arith.constant 0 : i32
    %c0_i32_0 = arith.constant 0 : i32
    return %arg0, %c0_i32 : i32, i32
  }
  func.func @transform_1(%arg0: i32) -> (i32, i32) {
    %c0_i32 = arith.constant 0 : i32
    %c0_i32_0 = arith.constant 0 : i32
    %c0_i32_1 = arith.constant 0 : i32
    return %c0_i32, %c0_i32_0 : i32, i32
  }
  func.func @transform_2(%arg0: i32) -> (i32, i32) {
    %c0_i32 = arith.constant 0 : i32
    %c0_i32_0 = arith.constant 0 : i32
    %c0_i32_1 = arith.constant 0 : i32
    return %c0_i32, %c0_i32_0 : i32, i32
  }
  func.func @transform_3(%arg0: i32) -> (i32, i32) {
    %c0_i32 = arith.constant 0 : i32
    %c0_i32_0 = arith.constant 0 : i32
    return %arg0, %c0_i32 : i32, i32
  }
}

</mosaic_0001>

<llo_original>
// kernel: tpu_custom_call.1
$region0: #{tpu_custom_call.1}
  #allocation0 [shape = 'u32[]', space=smem, size = 0x4, offset = 0x4, fixed_abs, tag = 'smem constant byte address 0x4 - core index']
  #allocation1 [shape = 'u32[144,128]{1,0:T(1,128)}', space=vmem, size = 0x12000, scoped, tag = 'internal scratch']
  %s0 = inlined_call_operand.vmem [shape: f32[8,1536], index: 0, kind: input, shape index: {}]
  %s1 = inlined_call_operand.vmem [shape: f32[1536,2], index: 1, kind: input, shape index: {}]
  %s2 = inlined_call_operand.vmem [shape: f32[1,2], index: 2, kind: input, shape index: {}]
  %s3 = inlined_call_operand.vmem [shape: f32[8,2], index: 3, kind: output, shape index: {}]
  %s4 = sld [smem:[#allocation0]]
  $region22: #{tpu_custom_call.1} parent=0
    _
  %s6 = ssub.s32 1, %s4
  %s7 = scalar_select 0, %s6, %s4
  // Predicated region
  $region2: #{tpu_custom_call.1} parent=0 // pred_check
    _
  $region3: #{tpu_custom_call.1} parent=0 // pred_check_branch
    %9 = sbr.rel (0) target = $region5
  $region4: #{tpu_custom_call.1} parent=0 // pred_region
    _
  $region5: #{tpu_custom_call.1} parent=0 // pred_fallthru
    _
  // Predicated region
  $region6: #{tpu_custom_call.1} parent=0 // pred_check
    _
  $region7: #{tpu_custom_call.1} parent=0 // pred_check_branch
    %11 = sbr.rel (0) target = $region9
  $region8: #{tpu_custom_call.1} parent=0 // pred_region
    _
  $region9: #{tpu_custom_call.1} parent=0 // pred_fallthru
    _
  // Predicated region
  $region10: #{tpu_custom_call.1} parent=0 // pred_check
    _
  $region11: #{tpu_custom_call.1} parent=0 // pred_check_branch
    %13 = sbr.rel (0) target = $region13
  $region12: #{tpu_custom_call.1} parent=0 // pred_region
    _
  $region13: #{tpu_custom_call.1} parent=0 // pred_fallthru
    _
  %v14 = vld [vmem:[%s0] sm:$0xff]
  %v15 = vld [vmem:[%s0 + $0x8] sm:$0xff]
  %v16 = vld [vmem:[%s0 + $0x10] sm:$0xff]
  %v17 = vld [vmem:[%s0 + $0x18] sm:$0xff]
  %v18 = vld [vmem:[%s0 + $0x20] sm:$0xff]
  %v19 = vld [vmem:[%s0 + $0x28] sm:$0xff]
  %v20 = vld [vmem:[%s0 + $0x30] sm:$0xff]
  %v21 = vld [vmem:[%s0 + $0x38] sm:$0xff]
  %v22 = vld [vmem:[%s0 + $0x40] sm:$0xff]
  %v23 = vld [vmem:[%s0 + $0x48] sm:$0xff]
  %v24 = vld [vmem:[%s0 + $0x50] sm:$0xff]
  %v25 = vld [vmem:[%s0 + $0x58] sm:$0xff]
  %v26 = vld [vmem:[%s1] sm:$0xff]
  %v27 = vld [vmem:[%s1 + $0x8] sm:$0xff]
  %v28 = vld [vmem:[%s1 + $0x10] sm:$0xff]
  %v29 = vld [vmem:[%s1 + $0x18] sm:$0xff]
  %v30 = vld [vmem:[%s1 + $0x20] sm:$0xff]
  %v31 = vld [vmem:[%s1 + $0x28] sm:$0xff]
  %v32 = vld [vmem:[%s1 + $0x30] sm:$0xff]
  %v33 = vld [vmem:[%s1 + $0x38] sm:$0xff]
  %v34 = vld [vmem:[%s1 + $0x40] sm:$0xff]
  %v35 = vld [vmem:[%s1 + $0x48] sm:$0xff]
  %v36 = vld [vmem:[%s1 + $0x50] sm:$0xff]
  %v37 = vld [vmem:[%s1 + $0x58] sm:$0xff]
  %v38 = vld [vmem:[%s1 + $0x60] sm:$0xff]
  %v39 = vld [vmem:[%s1 + $0x68] sm:$0xff]
  %v40 = vld [vmem:[%s1 + $0x70] sm:$0xff]
  %v41 = vld [vmem:[%s1 + $0x78] sm:$0xff]
  %v42 = vld [vmem:[%s1 + $0x80] sm:$0xff]
  %v43 = vld [vmem:[%s1 + $0x88] sm:$0xff]
  %v44 = vld [vmem:[%s1 + $0x90] sm:$0xff]
  %v45 = vld [vmem:[%s1 + $0x98] sm:$0xff]
  %v46 = vld [vmem:[%s1 + $0xa0] sm:$0xff]
  %v47 = vld [vmem:[%s1 + $0xa8] sm:$0xff]
  %v48 = vld [vmem:[%s1 + $0xb0] sm:$0xff]
  %v49 = vld [vmem:[%s1 + $0xb8] sm:$0xff]
  %v50 = vld [vmem:[%s1 + $0xc0] sm:$0xff]
  %v51 = vld [vmem:[%s1 + $0xc8] sm:$0xff]
  %v52 = vld [vmem:[%s1 + $0xd0] sm:$0xff]
  %v53 = vld [vmem:[%s1 + $0xd8] sm:$0xff]
  %v54 = vld [vmem:[%s1 + $0xe0] sm:$0xff]
  %v55 = vld [vmem:[%s1 + $0xe8] sm:$0xff]
  %v56 = vld [vmem:[%s1 + $0xf0] sm:$0xff]
  %v57 = vld [vmem:[%s1 + $0xf8] sm:$0xff]
  %v58 = vld [vmem:[%s1 + $0x100] sm:$0xff]
  %v59 = vld [vmem:[%s1 + $0x108] sm:$0xff]
  %v60 = vld [vmem:[%s1 + $0x110] sm:$0xff]
  %v61 = vld [vmem:[%s1 + $0x118] sm:$0xff]
  %v62 = vld [vmem:[%s1 + $0x120] sm:$0xff]
  %v63 = vld [vmem:[%s1 + $0x128] sm:$0xff]
  %v64 = vld [vmem:[%s1 + $0x130] sm:$0xff]
  %v65 = vld [vmem:[%s1 + $0x138] sm:$0xff]
  %v66 = vld [vmem:[%s1 + $0x140] sm:$0xff]
  %v67 = vld [vmem:[%s1 + $0x148] sm:$0xff]
  %v68 = vld [vmem:[%s1 + $0x150] sm:$0xff]
  %v69 = vld [vmem:[%s1 + $0x158] sm:$0xff]
  %v70 = vld [vmem:[%s1 + $0x160] sm:$0xff]
  %v71 = vld [vmem:[%s1 + $0x168] sm:$0xff]
  %v72 = vld [vmem:[%s1 + $0x170] sm:$0xff]
  %v73 = vld [vmem:[%s1 + $0x178] sm:$0xff]
  %v74 = vld [vmem:[%s1 + $0x180] sm:$0xff]
  %v75 = vld [vmem:[%s1 + $0x188] sm:$0xff]
  %v76 = vld [vmem:[%s1 + $0x190] sm:$0xff]
  %v77 = vld [vmem:[%s1 + $0x198] sm:$0xff]
  %v78 = vld [vmem:[%s1 + $0x1a0] sm:$0xff]
  %v79 = vld [vmem:[%s1 + $0x1a8] sm:$0xff]
  %v80 = vld [vmem:[%s1 + $0x1b0] sm:$0xff]
  %v81 = vld [vmem:[%s1 + $0x1b8] sm:$0xff]
  %v82 = vld [vmem:[%s1 + $0x1c0] sm:$0xff]
  %v83 = vld [vmem:[%s1 + $0x1c8] sm:$0xff]
  %v84 = vld [vmem:[%s1 + $0x1d0] sm:$0xff]
  %v85 = vld [vmem:[%s1 + $0x1d8] sm:$0xff]
  %v86 = vld [vmem:[%s1 + $0x1e0] sm:$0xff]
  %v87 = vld [vmem:[%s1 + $0x1e8] sm:$0xff]
  %v88 = vld [vmem:[%s1 + $0x1f0] sm:$0xff]
  %v89 = vld [vmem:[%s1 + $0x1f8] sm:$0xff]
  %v90 = vld [vmem:[%s1 + $0x200] sm:$0xff]
  %v91 = vld [vmem:[%s1 + $0x208] sm:$0xff]
  %v92 = vld [vmem:[%s1 + $0x210] sm:$0xff]
  %v93 = vld [vmem:[%s1 + $0x218] sm:$0xff]
  %v94 = vld [vmem:[%s1 + $0x220] sm:$0xff]
  %v95 = vld [vmem:[%s1 + $0x228] sm:$0xff]
  %v96 = vld [vmem:[%s1 + $0x230] sm:$0xff]
  %v97 = vld [vmem:[%s1 + $0x238] sm:$0xff]
  %v98 = vld [vmem:[%s1 + $0x240] sm:$0xff]
  %v99 = vld [vmem:[%s1 + $0x248] sm:$0xff]
  %v100 = vld [vmem:[%s1 + $0x250] sm:$0xff]
  %v101 = vld [vmem:[%s1 + $0x258] sm:$0xff]
  %v102 = vld [vmem:[%s1 + $0x260] sm:$0xff]
  %v103 = vld [vmem:[%s1 + $0x268] sm:$0xff]
  %v104 = vld [vmem:[%s1 + $0x270] sm:$0xff]
  %v105 = vld [vmem:[%s1 + $0x278] sm:$0xff]
  %v106 = vld [vmem:[%s1 + $0x280] sm:$0xff]
  %v107 = vld [vmem:[%s1 + $0x288] sm:$0xff]
  %v108 = vld [vmem:[%s1 + $0x290] sm:$0xff]
  %v109 = vld [vmem:[%s1 + $0x298] sm:$0xff]
  %v110 = vld [vmem:[%s1 + $0x2a0] sm:$0xff]
  %v111 = vld [vmem:[%s1 + $0x2a8] sm:$0xff]
  %v112 = vld [vmem:[%s1 + $0x2b0] sm:$0xff]
  %v113 = vld [vmem:[%s1 + $0x2b8] sm:$0xff]
  %v114 = vld [vmem:[%s1 + $0x2c0] sm:$0xff]
  %v115 = vld [vmem:[%s1 + $0x2c8] sm:$0xff]
  %v116 = vld [vmem:[%s1 + $0x2d0] sm:$0xff]
  %v117 = vld [vmem:[%s1 + $0x2d8] sm:$0xff]
  %v118 = vld [vmem:[%s1 + $0x2e0] sm:$0xff]
  %v119 = vld [vmem:[%s1 + $0x2e8] sm:$0xff]
  %v120 = vld [vmem:[%s1 + $0x2f0] sm:$0xff]
  %v121 = vld [vmem:[%s1 + $0x2f8] sm:$0xff]
  %v122 = vld [vmem:[%s1 + $0x300] sm:$0xff]
  %v123 = vld [vmem:[%s1 + $0x308] sm:$0xff]
  %v124 = vld [vmem:[%s1 + $0x310] sm:$0xff]
  %v125 = vld [vmem:[%s1 + $0x318] sm:$0xff]
  %v126 = vld [vmem:[%s1 + $0x320] sm:$0xff]
  %v127 = vld [vmem:[%s1 + $0x328] sm:$0xff]
  %v128 = vld [vmem:[%s1 + $0x330] sm:$0xff]
  %v129 = vld [vmem:[%s1 + $0x338] sm:$0xff]
  %v130 = vld [vmem:[%s1 + $0x340] sm:$0xff]
  %v131 = vld [vmem:[%s1 + $0x348] sm:$0xff]
  %v132 = vld [vmem:[%s1 + $0x350] sm:$0xff]
  %v133 = vld [vmem:[%s1 + $0x358] sm:$0xff]
  %v134 = vld [vmem:[%s1 + $0x360] sm:$0xff]
  %v135 = vld [vmem:[%s1 + $0x368] sm:$0xff]
  %v136 = vld [vmem:[%s1 + $0x370] sm:$0xff]
  %v137 = vld [vmem:[%s1 + $0x378] sm:$0xff]
  %v138 = vld [vmem:[%s1 + $0x380] sm:$0xff]
  %v139 = vld [vmem:[%s1 + $0x388] sm:$0xff]
  %v140 = vld [vmem:[%s1 + $0x390] sm:$0xff]
  %v141 = vld [vmem:[%s1 + $0x398] sm:$0xff]
  %v142 = vld [vmem:[%s1 + $0x3a0] sm:$0xff]
  %v143 = vld [vmem:[%s1 + $0x3a8] sm:$0xff]
  %v144 = vld [vmem:[%s1 + $0x3b0] sm:$0xff]
  %v145 = vld [vmem:[%s1 + $0x3b8] sm:$0xff]
  %v146 = vld [vmem:[%s1 + $0x3c0] sm:$0xff]
  %v147 = vld [vmem:[%s1 + $0x3c8] sm:$0xff]
  %v148 = vld [vmem:[%s1 + $0x3d0] sm:$0xff]
  %v149 = vld [vmem:[%s1 + $0x3d8] sm:$0xff]
  %v150 = vld [vmem:[%s1 + $0x3e0] sm:$0xff]
  %v151 = vld [vmem:[%s1 + $0x3e8] sm:$0xff]
  %v152 = vld [vmem:[%s1 + $0x3f0] sm:$0xff]
  %v153 = vld [vmem:[%s1 + $0x3f8] sm:$0xff]
  %v154 = vld [vmem:[%s1 + $0x400] sm:$0xff]
  %v155 = vld [vmem:[%s1 + $0x408] sm:$0xff]
  %v156 = vld [vmem:[%s1 + $0x410] sm:$0xff]
  %v157 = vld [vmem:[%s1 + $0x418] sm:$0xff]
  %v158 = vld [vmem:[%s1 + $0x420] sm:$0xff]
  %v159 = vld [vmem:[%s1 + $0x428] sm:$0xff]
  %v160 = vld [vmem:[%s1 + $0x430] sm:$0xff]
  %v161 = vld [vmem:[%s1 + $0x438] sm:$0xff]
  %v162 = vld [vmem:[%s1 + $0x440] sm:$0xff]
  %v163 = vld [vmem:[%s1 + $0x448] sm:$0xff]
  %v164 = vld [vmem:[%s1 + $0x450] sm:$0xff]
  %v165 = vld [vmem:[%s1 + $0x458] sm:$0xff]
  %v166 = vld [vmem:[%s1 + $0x460] sm:$0xff]
  %v167 = vld [vmem:[%s1 + $0x468] sm:$0xff]
  %v168 = vld [vmem:[%s1 + $0x470] sm:$0xff]
  %v169 = vld [vmem:[%s1 + $0x478] sm:$0xff]
  %v170 = vld [vmem:[%s1 + $0x480] sm:$0xff]
  %v171 = vld [vmem:[%s1 + $0x488] sm:$0xff]
  %v172 = vld [vmem:[%s1 + $0x490] sm:$0xff]
  %v173 = vld [vmem:[%s1 + $0x498] sm:$0xff]
  %v174 = vld [vmem:[%s1 + $0x4a0] sm:$0xff]
  %v175 = vld [vmem:[%s1 + $0x4a8] sm:$0xff]
  %v176 = vld [vmem:[%s1 + $0x4b0] sm:$0xff]
  %v177 = vld [vmem:[%s1 + $0x4b8] sm:$0xff]
  %v178 = vld [vmem:[%s1 + $0x4c0] sm:$0xff]
  %v179 = vld [vmem:[%s1 + $0x4c8] sm:$0xff]
  %v180 = vld [vmem:[%s1 + $0x4d0] sm:$0xff]
  %v181 = vld [vmem:[%s1 + $0x4d8] sm:$0xff]
  %v182 = vld [vmem:[%s1 + $0x4e0] sm:$0xff]
  %v183 = vld [vmem:[%s1 + $0x4e8] sm:$0xff]
  %v184 = vld [vmem:[%s1 + $0x4f0] sm:$0xff]
  %v185 = vld [vmem:[%s1 + $0x4f8] sm:$0xff]
  %v186 = vld [vmem:[%s1 + $0x500] sm:$0xff]
  %v187 = vld [vmem:[%s1 + $0x508] sm:$0xff]
  %v188 = vld [vmem:[%s1 + $0x510] sm:$0xff]
  %v189 = vld [vmem:[%s1 + $0x518] sm:$0xff]
  %v190 = vld [vmem:[%s1 + $0x520] sm:$0xff]
  %v191 = vld [vmem:[%s1 + $0x528] sm:$0xff]
  %v192 = vld [vmem:[%s1 + $0x530] sm:$0xff]
  %v193 = vld [vmem:[%s1 + $0x538] sm:$0xff]
  %v194 = vld [vmem:[%s1 + $0x540] sm:$0xff]
  %v195 = vld [vmem:[%s1 + $0x548] sm:$0xff]
  %v196 = vld [vmem:[%s1 + $0x550] sm:$0xff]
  %v197 = vld [vmem:[%s1 + $0x558] sm:$0xff]
  %v198 = vld [vmem:[%s1 + $0x560] sm:$0xff]
  %v199 = vld [vmem:[%s1 + $0x568] sm:$0xff]
  %v200 = vld [vmem:[%s1 + $0x570] sm:$0xff]
  %v201 = vld [vmem:[%s1 + $0x578] sm:$0xff]
  %v202 = vld [vmem:[%s1 + $0x580] sm:$0xff]
  %v203 = vld [vmem:[%s1 + $0x588] sm:$0xff]
  %v204 = vld [vmem:[%s1 + $0x590] sm:$0xff]
  %v205 = vld [vmem:[%s1 + $0x598] sm:$0xff]
  %v206 = vld [vmem:[%s1 + $0x5a0] sm:$0xff]
  %v207 = vld [vmem:[%s1 + $0x5a8] sm:$0xff]
  %v208 = vld [vmem:[%s1 + $0x5b0] sm:$0xff]
  %v209 = vld [vmem:[%s1 + $0x5b8] sm:$0xff]
  %v210 = vld [vmem:[%s1 + $0x5c0] sm:$0xff]
  %v211 = vld [vmem:[%s1 + $0x5c8] sm:$0xff]
  %v212 = vld [vmem:[%s1 + $0x5d0] sm:$0xff]
  %v213 = vld [vmem:[%s1 + $0x5d8] sm:$0xff]
  %v214 = vld [vmem:[%s1 + $0x5e0] sm:$0xff]
  %v215 = vld [vmem:[%s1 + $0x5e8] sm:$0xff]
  %v216 = vld [vmem:[%s1 + $0x5f0] sm:$0xff]
  %v217 = vld [vmem:[%s1 + $0x5f8] sm:$0xff]
  %v218 = vld [vmem:[%s2] sm:$0x1]
  %v220 = vlaneseq
  %v221 = vshrl.u32 %v220, 7
  %v222 = vsub.s32 0, %v221
  %v223 = vrot.slane %v218, %v222
  %225 = vmatprep.subr.mxu0 0.0
  %226 = vmatpush1.msra.mxu0 %v26
  %227 = vmatprep.subr.mxu0 0.0
  %228 = vmatpush1.msra.mxu0 %v27
  %229 = vmatprep.subr.mxu0 0.0
  %230 = vmatpush1.msra.mxu0 %v28
  %231 = vmatprep.subr.mxu0 0.0
  %232 = vmatpush1.msra.mxu0 %v29
  %233 = vmatprep.subr.mxu0 0.0
  %234 = vmatpush1.msra.mxu0 %v30
  %235 = vmatprep.subr.mxu0 0.0
  %236 = vmatpush1.msra.mxu0 %v31
  %237 = vmatprep.subr.mxu0 0.0
  %238 = vmatpush1.msra.mxu0 %v32
  %239 = vmatprep.subr.mxu0 0.0
  %240 = vmatpush1.msra.mxu0 %v33
  %241 = vmatprep.subr.mxu0 0.0
  %242 = vmatpush1.msra.mxu0 %v34
  %243 = vmatprep.subr.mxu0 0.0
  %244 = vmatpush1.msra.mxu0 %v35
  %245 = vmatprep.subr.mxu0 0.0
  %246 = vmatpush1.msra.mxu0 %v36
  %247 = vmatprep.subr.mxu0 0.0
  %248 = vmatpush1.msra.mxu0 %v37
  %249 = vmatprep.subr.mxu0 0.0
  %250 = vmatpush1.msra.mxu0 %v38
  %251 = vmatprep.subr.mxu0 0.0
  %252 = vmatpush1.msra.mxu0 %v39
  %253 = vmatprep.subr.mxu0 0.0
  %254 = vmatpush1.msra.mxu0 %v40
  %255 = vmatprep.subr.mxu0 0.0
  %256 = vmatpush1.msra.mxu0 %v41
  %257 = vmatprep.subr.mxu0 0.0
  %258 = vmatpush1.msra.mxu0 %v42
  %259 = vmatprep.subr.mxu0 0.0
  %260 = vmatpush1.msra.mxu0 %v43
  %261 = vmatprep.subr.mxu0 0.0
  %262 = vmatpush1.msra.mxu0 %v44
  %263 = vmatprep.subr.mxu0 0.0
  %264 = vmatpush1.msra.mxu0 %v45
  %265 = vmatprep.subr.mxu0 0.0
  %266 = vmatpush1.msra.mxu0 %v46
  %267 = vmatprep.subr.mxu0 0.0
  %268 = vmatpush1.msra.mxu0 %v47
  %269 = vmatprep.subr.mxu0 0.0
  %270 = vmatpush1.msra.mxu0 %v48
  %271 = vmatprep.subr.mxu0 0.0
  %272 = vmatpush1.msra.mxu0 %v49
  %273 = vmatprep.subr.mxu0 0.0
  %274 = vmatpush1.msra.mxu0 %v50
  %275 = vmatprep.subr.mxu0 0.0
  %276 = vmatpush1.msra.mxu0 %v51
  %277 = vmatprep.subr.mxu0 0.0
  %278 = vmatpush1.msra.mxu0 %v52
  %279 = vmatprep.subr.mxu0 0.0
  %280 = vmatpush1.msra.mxu0 %v53
  %281 = vmatprep.subr.mxu0 0.0
  %282 = vmatpush1.msra.mxu0 %v54
  %283 = vmatprep.subr.mxu0 0.0
  %284 = vmatpush1.msra.mxu0 %v55
  %285 = vmatprep.subr.mxu0 0.0
  %286 = vmatpush1.msra.mxu0 %v56
  %287 = vmatprep.subr.mxu0 0.0
  %288 = vmatpush1.msra.mxu0 %v57
  %289 = vmatprep.mubr.f32.mxu0 %v15
  %290 = vmatmul.mubr.f32.gmra.mrb[0].mxu0 %v14
  %v291 = vpop.f32.mrb[0].mxu0
  %v292 = vadd.f32 %v223, %v291
  %v293 = vpop.f32.mrb[0].mxu0
  %294 = vdwg.mxu0
  %295 = vmatprep.subr.mxu0 0.0
  %296 = vmatpush1.msra.mxu0 %v58
  %297 = vmatprep.subr.mxu0 0.0
  %298 = vmatpush1.msra.mxu0 %v59
  %299 = vmatprep.subr.mxu0 0.0
  %300 = vmatpush1.msra.mxu0 %v60
  %301 = vmatprep.subr.mxu0 0.0
  %302 = vmatpush1.msra.mxu0 %v61
  %303 = vmatprep.subr.mxu0 0.0
  %304 = vmatpush1.msra.mxu0 %v62
  %305 = vmatprep.subr.mxu0 0.0
  %306 = vmatpush1.msra.mxu0 %v63
  %307 = vmatprep.subr.mxu0 0.0
  %308 = vmatpush1.msra.mxu0 %v64
  %309 = vmatprep.subr.mxu0 0.0
  %310 = vmatpush1.msra.mxu0 %v65
  %311 = vmatprep.subr.mxu0 0.0
  %312 = vmatpush1.msra.mxu0 %v66
  %313 = vmatprep.subr.mxu0 0.0
  %314 = vmatpush1.msra.mxu0 %v67
  %315 = vmatprep.subr.mxu0 0.0
  %316 = vmatpush1.msra.mxu0 %v68
  %317 = vmatprep.subr.mxu0 0.0
  %318 = vmatpush1.msra.mxu0 %v69
  %319 = vmatprep.subr.mxu0 0.0
  %320 = vmatpush1.msra.mxu0 %v70
  %321 = vmatprep.subr.mxu0 0.0
  %322 = vmatpush1.msra.mxu0 %v71
  %323 = vmatprep.subr.mxu0 0.0
  %324 = vmatpush1.msra.mxu0 %v72
  %325 = vmatprep.subr.mxu0 0.0
  %326 = vmatpush1.msra.mxu0 %v73
  %327 = vmatprep.subr.mxu0 0.0
  %328 = vmatpush1.msra.mxu0 %v74
  %329 = vmatprep.subr.mxu0 0.0
  %330 = vmatpush1.msra.mxu0 %v75
  %331 = vmatprep.subr.mxu0 0.0
  %332 = vmatpush1.msra.mxu0 %v76
  %333 = vmatprep.subr.mxu0 0.0
  %334 = vmatpush1.msra.mxu0 %v77
  %335 = vmatprep.subr.mxu0 0.0
  %336 = vmatpush1.msra.mxu0 %v78
  %337 = vmatprep.subr.mxu0 0.0
  %338 = vmatpush1.msra.mxu0 %v79
  %339 = vmatprep.subr.mxu0 0.0
  %340 = vmatpush1.msra.mxu0 %v80
  %341 = vmatprep.subr.mxu0 0.0
  %342 = vmatpush1.msra.mxu0 %v81
  %343 = vmatprep.subr.mxu0 0.0
  %344 = vmatpush1.msra.mxu0 %v82
  %345 = vmatprep.subr.mxu0 0.0
  %346 = vmatpush1.msra.mxu0 %v83
  %347 = vmatprep.subr.mxu0 0.0
  %348 = vmatpush1.msra.mxu0 %v84
  %349 = vmatprep.subr.mxu0 0.0
  %350 = vmatpush1.msra.mxu0 %v85
  %351 = vmatprep.subr.mxu0 0.0
  %352 = vmatpush1.msra.mxu0 %v86
  %353 = vmatprep.subr.mxu0 0.0
  %354 = vmatpush1.msra.mxu0 %v87
  %355 = vmatprep.subr.mxu0 0.0
  %356 = vmatpush1.msra.mxu0 %v88
  %357 = vmatprep.subr.mxu0 0.0
  %358 = vmatpush1.msra.mxu0 %v89
  %359 = vmatprep.mubr.f32.mxu0 %v17
  %360 = vmatmul.mubr.f32.gmra.mrb[0].mxu0 %v16
  %v361 = vpop.f32.mrb[0].mxu0
  %v362 = vadd.f32 %v292, %v361
  %v363 = vpop.f32.mrb[0].mxu0
  %364 = vdwg.mxu0
  %365 = vmatprep.subr.mxu0 0.0
  %366 = vmatpush1.msra.mxu0 %v90
  %367 = vmatprep.subr.mxu0 0.0
  %368 = vmatpush1.msra.mxu0 %v91
  %369 = vmatprep.subr.mxu0 0.0
  %370 = vmatpush1.msra.mxu0 %v92
  %371 = vmatprep.subr.mxu0 0.0
  %372 = vmatpush1.msra.mxu0 %v93
  %373 = vmatprep.subr.mxu0 0.0
  %374 = vmatpush1.msra.mxu0 %v94
  %375 = vmatprep.subr.mxu0 0.0
  %376 = vmatpush1.msra.mxu0 %v95
  %377 = vmatprep.subr.mxu0 0.0
  %378 = vmatpush1.msra.mxu0 %v96
  %379 = vmatprep.subr.mxu0 0.0
  %380 = vmatpush1.msra.mxu0 %v97
  %381 = vmatprep.subr.mxu0 0.0
  %382 = vmatpush1.msra.mxu0 %v98
  %383 = vmatprep.subr.mxu0 0.0
  %384 = vmatpush1.msra.mxu0 %v99
  %385 = vmatprep.subr.mxu0 0.0
  %386 = vmatpush1.msra.mxu0 %v100
  %387 = vmatprep.subr.mxu0 0.0
  %388 = vmatpush1.msra.mxu0 %v101
  %389 = vmatprep.subr.mxu0 0.0
  %390 = vmatpush1.msra.mxu0 %v102
  %391 = vmatprep.subr.mxu0 0.0
  %392 = vmatpush1.msra.mxu0 %v103
  %393 = vmatprep.subr.mxu0 0.0
  %394 = vmatpush1.msra.mxu0 %v104
  %395 = vmatprep.subr.mxu0 0.0
  %396 = vmatpush1.msra.mxu0 %v105
  %397 = vmatprep.subr.mxu0 0.0
  %398 = vmatpush1.msra.mxu0 %v106
  %399 = vmatprep.subr.mxu0 0.0
  %400 = vmatpush1.msra.mxu0 %v107
  %401 = vmatprep.subr.mxu0 0.0
  %402 = vmatpush1.msra.mxu0 %v108
  %403 = vmatprep.subr.mxu0 0.0
  %404 = vmatpush1.msra.mxu0 %v109
  %405 = vmatprep.subr.mxu0 0.0
  %406 = vmatpush1.msra.mxu0 %v110
  %407 = vmatprep.subr.mxu0 0.0
  %408 = vmatpush1.msra.mxu0 %v111
  %409 = vmatprep.subr.mxu0 0.0
  %410 = vmatpush1.msra.mxu0 %v112
  %411 = vmatprep.subr.mxu0 0.0
  %412 = vmatpush1.msra.mxu0 %v113
  %413 = vmatprep.subr.mxu0 0.0
  %414 = vmatpush1.msra.mxu0 %v114
  %415 = vmatprep.subr.mxu0 0.0
  %416 = vmatpush1.msra.mxu0 %v115
  %417 = vmatprep.subr.mxu0 0.0
  %418 = vmatpush1.msra.mxu0 %v116
  %419 = vmatprep.subr.mxu0 0.0
  %420 = vmatpush1.msra.mxu0 %v117
  %421 = vmatprep.subr.mxu0 0.0
  %422 = vmatpush1.msra.mxu0 %v118
  %423 = vmatprep.subr.mxu0 0.0
  %424 = vmatpush1.msra.mxu0 %v119
  %425 = vmatprep.subr.mxu0 0.0
  %426 = vmatpush1.msra.mxu0 %v120
  %427 = vmatprep.subr.mxu0 0.0
  %428 = vmatpush1.msra.mxu0 %v121
  %429 = vmatprep.mubr.f32.mxu0 %v19
  %430 = vmatmul.mubr.f32.gmra.mrb[0].mxu0 %v18
  %v431 = vpop.f32.mrb[0].mxu0
  %v432 = vadd.f32 %v362, %v431
  %v433 = vpop.f32.mrb[0].mxu0
  %434 = vdwg.mxu0
  %435 = vmatprep.subr.mxu0 0.0
  %436 = vmatpush1.msra.mxu0 %v122
  %437 = vmatprep.subr.mxu0 0.0
  %438 = vmatpush1.msra.mxu0 %v123
  %439 = vmatprep.subr.mxu0 0.0
  %440 = vmatpush1.msra.mxu0 %v124
  %441 = vmatprep.subr.mxu0 0.0
  %442 = vmatpush1.msra.mxu0 %v125
  %443 = vmatprep.subr.mxu0 0.0
  %444 = vmatpush1.msra.mxu0 %v126
  %445 = vmatprep.subr.mxu0 0.0
  %446 = vmatpush1.msra.mxu0 %v127
  %447 = vmatprep.subr.mxu0 0.0
  %448 = vmatpush1.msra.mxu0 %v128
  %449 = vmatprep.subr.mxu0 0.0
  %450 = vmatpush1.msra.mxu0 %v129
  %451 = vmatprep.subr.mxu0 0.0
  %452 = vmatpush1.msra.mxu0 %v130
  %453 = vmatprep.subr.mxu0 0.0
  %454 = vmatpush1.msra.mxu0 %v131
  %455 = vmatprep.subr.mxu0 0.0
  %456 = vmatpush1.msra.mxu0 %v132
  %457 = vmatprep.subr.mxu0 0.0
  %458 = vmatpush1.msra.mxu0 %v133
  %459 = vmatprep.subr.mxu0 0.0
  %460 = vmatpush1.msra.mxu0 %v134
  %461 = vmatprep.subr.mxu0 0.0
  %462 = vmatpush1.msra.mxu0 %v135
  %463 = vmatprep.subr.mxu0 0.0
  %464 = vmatpush1.msra.mxu0 %v136
  %465 = vmatprep.subr.mxu0 0.0
  %466 = vmatpush1.msra.mxu0 %v137
  %467 = vmatprep.subr.mxu0 0.0
  %468 = vmatpush1.msra.mxu0 %v138
  %469 = vmatprep.subr.mxu0 0.0
  %470 = vmatpush1.msra.mxu0 %v139
  %471 = vmatprep.subr.mxu0 0.0
  %472 = vmatpush1.msra.mxu0 %v140
  %473 = vmatprep.subr.mxu0 0.0
  %474 = vmatpush1.msra.mxu0 %v141
  %475 = vmatprep.subr.mxu0 0.0
  %476 = vmatpush1.msra.mxu0 %v142
  %477 = vmatprep.subr.mxu0 0.0
  %478 = vmatpush1.msra.mxu0 %v143
  %479 = vmatprep.subr.mxu0 0.0
  %480 = vmatpush1.msra.mxu0 %v144
  %481 = vmatprep.subr.mxu0 0.0
  %482 = vmatpush1.msra.mxu0 %v145
  %483 = vmatprep.subr.mxu0 0.0
  %484 = vmatpush1.msra.mxu0 %v146
  %485 = vmatprep.subr.mxu0 0.0
  %486 = vmatpush1.msra.mxu0 %v147
  %487 = vmatprep.subr.mxu0 0.0
  %488 = vmatpush1.msra.mxu0 %v148
  %489 = vmatprep.subr.mxu0 0.0
  %490 = vmatpush1.msra.mxu0 %v149
  %491 = vmatprep.subr.mxu0 0.0
  %492 = vmatpush1.msra.mxu0 %v150
  %493 = vmatprep.subr.mxu0 0.0
  %494 = vmatpush1.msra.mxu0 %v151
  %495 = vmatprep.subr.mxu0 0.0
  %496 = vmatpush1.msra.mxu0 %v152
  %497 = vmatprep.subr.mxu0 0.0
  %498 = vmatpush1.msra.mxu0 %v153
  %499 = vmatprep.mubr.f32.mxu0 %v21
  %500 = vmatmul.mubr.f32.gmra.mrb[0].mxu0 %v20
  %v501 = vpop.f32.mrb[0].mxu0
  %v502 = vadd.f32 %v432, %v501
  %v503 = vpop.f32.mrb[0].mxu0
  %504 = vdwg.mxu0
  %505 = vmatprep.subr.mxu0 0.0
  %506 = vmatpush1.msra.mxu0 %v154
  %507 = vmatprep.subr.mxu0 0.0
  %508 = vmatpush1.msra.mxu0 %v155
  %509 = vmatprep.subr.mxu0 0.0
  %510 = vmatpush1.msra.mxu0 %v156
  %511 = vmatprep.subr.mxu0 0.0
  %512 = vmatpush1.msra.mxu0 %v157
  %513 = vmatprep.subr.mxu0 0.0
  %514 = vmatpush1.msra.mxu0 %v158
  %515 = vmatprep.subr.mxu0 0.0
  %516 = vmatpush1.msra.mxu0 %v159
  %517 = vmatprep.subr.mxu0 0.0
  %518 = vmatpush1.msra.mxu0 %v160
  %519 = vmatprep.subr.mxu0 0.0
  %520 = vmatpush1.msra.mxu0 %v161
  %521 = vmatprep.subr.mxu0 0.0
  %522 = vmatpush1.msra.mxu0 %v162
  %523 = vmatprep.subr.mxu0 0.0
  %524 = vmatpush1.msra.mxu0 %v163
  %525 = vmatprep.subr.mxu0 0.0
  %526 = vmatpush1.msra.mxu0 %v164
  %527 = vmatprep.subr.mxu0 0.0
  %528 = vmatpush1.msra.mxu0 %v165
  %529 = vmatprep.subr.mxu0 0.0
  %530 = vmatpush1.msra.mxu0 %v166
  %531 = vmatprep.subr.mxu0 0.0
  %532 = vmatpush1.msra.mxu0 %v167
  %533 = vmatprep.subr.mxu0 0.0
  %534 = vmatpush1.msra.mxu0 %v168
  %535 = vmatprep.subr.mxu0 0.0
  %536 = vmatpush1.msra.mxu0 %v169
  %537 = vmatprep.subr.mxu0 0.0
  %538 = vmatpush1.msra.mxu0 %v170
  %539 = vmatprep.subr.mxu0 0.0
  %540 = vmatpush1.msra.mxu0 %v171
  %541 = vmatprep.subr.mxu0 0.0
  %542 = vmatpush1.msra.mxu0 %v172
  %543 = vmatprep.subr.mxu0 0.0
  %544 = vmatpush1.msra.mxu0 %v173
  %545 = vmatprep.subr.mxu0 0.0
  %546 = vmatpush1.msra.mxu0 %v174
  %547 = vmatprep.subr.mxu0 0.0
  %548 = vmatpush1.msra.mxu0 %v175
  %549 = vmatprep.subr.mxu0 0.0
  %550 = vmatpush1.msra.mxu0 %v176
  %551 = vmatprep.subr.mxu0 0.0
  %552 = vmatpush1.msra.mxu0 %v177
  %553 = vmatprep.subr.mxu0 0.0
  %554 = vmatpush1.msra.mxu0 %v178
  %555 = vmatprep.subr.mxu0 0.0
  %556 = vmatpush1.msra.mxu0 %v179
  %557 = vmatprep.subr.mxu0 0.0
  %558 = vmatpush1.msra.mxu0 %v180
  %559 = vmatprep.subr.mxu0 0.0
  %560 = vmatpush1.msra.mxu0 %v181
  %561 = vmatprep.subr.mxu0 0.0
  %562 = vmatpush1.msra.mxu0 %v182
  %563 = vmatprep.subr.mxu0 0.0
  %564 = vmatpush1.msra.mxu0 %v183
  %565 = vmatprep.subr.mxu0 0.0
  %566 = vmatpush1.msra.mxu0 %v184
  %567 = vmatprep.subr.mxu0 0.0
  %568 = vmatpush1.msra.mxu0 %v185
  %569 = vmatprep.mubr.f32.mxu0 %v23
  %570 = vmatmul.mubr.f32.gmra.mrb[0].mxu0 %v22
  %v571 = vpop.f32.mrb[0].mxu0
  %v572 = vadd.f32 %v502, %v571
  %v573 = vpop.f32.mrb[0].mxu0
  %574 = vdwg.mxu0
  %575 = vmatprep.subr.mxu0 0.0
  %576 = vmatpush1.msra.mxu0 %v186
  %577 = vmatprep.subr.mxu0 0.0
  %578 = vmatpush1.msra.mxu0 %v187
  %579 = vmatprep.subr.mxu0 0.0
  %580 = vmatpush1.msra.mxu0 %v188
  %581 = vmatprep.subr.mxu0 0.0
  %582 = vmatpush1.msra.mxu0 %v189
  %583 = vmatprep.subr.mxu0 0.0
  %584 = vmatpush1.msra.mxu0 %v190
  %585 = vmatprep.subr.mxu0 0.0
  %586 = vmatpush1.msra.mxu0 %v191
  %587 = vmatprep.subr.mxu0 0.0
  %588 = vmatpush1.msra.mxu0 %v192
  %589 = vmatprep.subr.mxu0 0.0
  %590 = vmatpush1.msra.mxu0 %v193
  %591 = vmatprep.subr.mxu0 0.0
  %592 = vmatpush1.msra.mxu0 %v194
  %593 = vmatprep.subr.mxu0 0.0
  %594 = vmatpush1.msra.mxu0 %v195
  %595 = vmatprep.subr.mxu0 0.0
  %596 = vmatpush1.msra.mxu0 %v196
  %597 = vmatprep.subr.mxu0 0.0
  %598 = vmatpush1.msra.mxu0 %v197
  %599 = vmatprep.subr.mxu0 0.0
  %600 = vmatpush1.msra.mxu0 %v198
  %601 = vmatprep.subr.mxu0 0.0
  %602 = vmatpush1.msra.mxu0 %v199
  %603 = vmatprep.subr.mxu0 0.0
  %604 = vmatpush1.msra.mxu0 %v200
  %605 = vmatprep.subr.mxu0 0.0
  %606 = vmatpush1.msra.mxu0 %v201
  %607 = vmatprep.subr.mxu0 0.0
  %608 = vmatpush1.msra.mxu0 %v202
  %609 = vmatprep.subr.mxu0 0.0
  %610 = vmatpush1.msra.mxu0 %v203
  %611 = vmatprep.subr.mxu0 0.0
  %612 = vmatpush1.msra.mxu0 %v204
  %613 = vmatprep.subr.mxu0 0.0
  %614 = vmatpush1.msra.mxu0 %v205
  %615 = vmatprep.subr.mxu0 0.0
  %616 = vmatpush1.msra.mxu0 %v206
  %617 = vmatprep.subr.mxu0 0.0
  %618 = vmatpush1.msra.mxu0 %v207
  %619 = vmatprep.subr.mxu0 0.0
  %620 = vmatpush1.msra.mxu0 %v208
  %621 = vmatprep.subr.mxu0 0.0
  %622 = vmatpush1.msra.mxu0 %v209
  %623 = vmatprep.subr.mxu0 0.0
  %624 = vmatpush1.msra.mxu0 %v210
  %625 = vmatprep.subr.mxu0 0.0
  %626 = vmatpush1.msra.mxu0 %v211
  %627 = vmatprep.subr.mxu0 0.0
  %628 = vmatpush1.msra.mxu0 %v212
  %629 = vmatprep.subr.mxu0 0.0
  %630 = vmatpush1.msra.mxu0 %v213
  %631 = vmatprep.subr.mxu0 0.0
  %632 = vmatpush1.msra.mxu0 %v214
  %633 = vmatprep.subr.mxu0 0.0
  %634 = vmatpush1.msra.mxu0 %v215
  %635 = vmatprep.subr.mxu0 0.0
  %636 = vmatpush1.msra.mxu0 %v216
  %637 = vmatprep.subr.mxu0 0.0
  %638 = vmatpush1.msra.mxu0 %v217
  %639 = vmatprep.mubr.f32.mxu0 %v25
  %640 = vmatmul.mubr.f32.gmra.mrb[0].mxu0 %v24
  %v641 = vpop.f32.mrb[0].mxu0
  %v642 = vadd.f32 %v572, %v641
  %v643 = vpop.f32.mrb[0].mxu0
  %644 = vdwg.mxu0
  %vm645 = vcmask 15360
  %v646 = vsel %vm645, %v642, -inf
  %647 = vmax.xlane.f32.xlu0 %v646
  %v648 = vpop.xlane.xlu0 %647
  %v649 = vsub.f32 %v642, %v648
  %v650 = vmul.f32 %v649, 1.442695
  %v651 = vpow.pop %v650
  %v652 = vsel %vm645, %v651, 0.0
  %653 = vadd.xlane.f32.xlu0 %v652
  %v654 = vpop.xlane.xlu0 %653
  %v655 = vrcp.pop %v654
  %v656 = vmul.f32 %v651, %v655
  %657 = vst.msk [vmem:[%s3] sm:$0xff] %vm645, %v656
  // Predicated region
  $region14: #{tpu_custom_call.1} parent=0 // pred_check
    _
  $region15: #{tpu_custom_call.1} parent=0 // pred_check_branch
    %659 = sbr.rel (0) target = $region17
  $region16: #{tpu_custom_call.1} parent=0 // pred_region
    _
  $region17: #{tpu_custom_call.1} parent=0 // pred_fallthru
    _
  // Predicated region
  $region18: #{tpu_custom_call.1} parent=0 // pred_check
    _
  $region19: #{tpu_custom_call.1} parent=0 // pred_check_branch
    %661 = sbr.rel (0) target = $region21
  $region20: #{tpu_custom_call.1} parent=0 // pred_region
    _
  $region21: #{tpu_custom_call.1} parent=0 // pred_fallthru
    _

</llo_original>
